<compile_context>
chip_gen: v7x
topology: tpu7x:2x2x1
jax: 0.10.0
libtpu: 0.0.40
codegen_flags: <defaults>
</compile_context>

<pallas_src>
import functools

import jax
import jax.numpy as jnp
import numpy as np
from jax.experimental import pallas as pl
from jax.experimental.pallas import tpu as pltpu


def _block_mask_kernel(pos_ref, bounds_ref, out_ref):
    px = pos_ref[:, 0:1]        # [TN, 1]
    py = pos_ref[:, 1:2]        # [TN, 1]
    minx = bounds_ref[0:1, :]   # [1, TB]
    miny = bounds_ref[1:2, :]
    maxx = bounds_ref[2:3, :]
    maxy = bounds_ref[3:4, :]

    # Direct range test, broadcast [TN,1] x [1,TB] -> [TN,TB].
    # Equivalent to: clamp(pos, bmin, bmax) == pos for both coords.
    inside = ((px >= minx) & (px <= maxx) &
              (py >= miny) & (py <= maxy))
    out_ref[...] = inside.astype(out_ref.dtype)


def _build_block_bounds(box_min, box_max, grid_x, grid_y):
    """Plain-JAX equivalent of Get_Block_Mask.build(): packed [4, B] bounds."""
    box_min = jnp.asarray(box_min, jnp.float32)
    box_max = jnp.asarray(box_max, jnp.float32)
    bbox = box_max[0, :2] - box_min[0, :2]
    size_x = bbox[0] / grid_x
    size_y = bbox[1] / grid_y
    start_x = box_min[0, 0] + size_x * jnp.arange(grid_x, dtype=jnp.float32)  # [gx]
    start_y = box_min[0, 1] + size_y * jnp.arange(grid_y, dtype=jnp.float32)  # [gy]
    # torch ordering: block index = i * grid_y + j
    minx = jnp.repeat(start_x, grid_y)          # [B]
    miny = jnp.tile(start_y, grid_x)            # [B]
    maxx = minx + size_x
    maxy = miny + size_y
    return jnp.stack([minx, miny, maxx, maxy], axis=0)   # [4, B]


# VMEM budget for the double-buffered (pos + out) tiles.  ~20 MiB live keeps us
# under the 32 MiB scoped default on v6e/v7x and well under v7x's 64 MiB
# physical ceiling; vmem_limit_bytes below covers v5e's 16 MiB default.
_VMEM_TILE_BUDGET = 20 << 20
_TB_CAP = 2048               # lane-tile cap for the block axis (multiple of 128)


@functools.partial(jax.jit, static_argnames=("grid_x", "grid_y", "tile_n"))
def get_block_mask(pos_xyz, box_min, box_max, *, grid_x, grid_y, tile_n=None):
    pos = jnp.asarray(pos_xyz, jnp.float32)
    N, D = pos.shape
    B = grid_x * grid_y

    bounds = _build_block_bounds(box_min, box_max, grid_x, grid_y)   # [4, B]

    # ---- block (lane) tile: full B when small, otherwise a 128-multiple ----
    if B <= _TB_CAP:
        TB = B                   # full-dim block => no 128-divisibility needed
    else:
        TB = _TB_CAP             # multiple of 128; ragged last tile is masked
    TB_pad = max(((TB + 127) // 128) * 128, 128)   # lane padding in VMEM

    # ---- point (sublane) tile: sized from the VMEM budget ----
    # live VMEM ~= 2 buffers * 4 B * TN * (TB_pad for out + 128 lane-padded pos)
    tn_budget = _VMEM_TILE_BUDGET // (2 * 4 * (TB_pad + 128))
    TN = max((tn_budget // 8) * 8, 8)
    if tile_n is not None:
        TN = min(TN, max((int(tile_n) // 8) * 8, 8))   # user cap, 8-aligned
    if TN >= N:
        TN = N                   # full-dim block => no 8-divisibility needed

    grid = (pl.cdiv(N, TN), pl.cdiv(B, TB))

    # Explicit scoped-VMEM limit (needed on v5e where the default is 16 MiB);
    # capped at 48 MiB so it is safe on v7x's 64 MiB physical VMEM.
    live_bytes = 2 * 4 * TN * (TB_pad + 128) + 2 * 4 * 8 * TB_pad
    vmem_limit = int(min(max(live_bytes * 5 // 4, 16 << 20), 48 << 20))

    cost = pl.CostEstimate(
        flops=8 * N * B,
        transcendentals=0,
        bytes_accessed=4 * N * B + 4 * N * D + 4 * 4 * B,
    )

    out = pl.pallas_call(
        _block_mask_kernel,
        out_shape=jax.ShapeDtypeStruct((N, B), jnp.float32),
        grid_spec=pltpu.PrefetchScalarGridSpec(
            num_scalar_prefetch=0,
            grid=grid,
            in_specs=[
                pl.BlockSpec((TN, D), lambda i, j: (i, 0)),   # pos_xyz (x,y used)
                pl.BlockSpec((4, TB), lambda i, j: (0, j)),   # packed block bounds
            ],
            out_specs=pl.BlockSpec((TN, TB), lambda i, j: (i, j)),
        ),
        compiler_params=pltpu.CompilerParams(
            dimension_semantics=("parallel", "parallel"),
            vmem_limit_bytes=vmem_limit),
        cost_estimate=cost,
    )(pos, bounds)

    return out


def _reference(pos_xyz, box_min, box_max, grid_x, grid_y):
    """Pure-numpy replica of the torch forward pass (clamp formulation)."""
    pos = np.asarray(pos_xyz, np.float32)[:, :2]
    bounds = np.asarray(_build_block_bounds(box_min, box_max, grid_x, grid_y))
    results = []
    for b in range(grid_x * grid_y):
        bmin = np.array([[bounds[0, b], bounds[1, b]]], np.float32)
        bmax = np.array([[bounds[2, b], bounds[3, b]]], np.float32)
        clip = np.maximum(np.minimum(pos, bmax), bmin)
        m = (clip == pos).astype(np.int32).sum(-1, keepdims=True)
        results.append((m == 2).astype(np.float32))
    return np.concatenate(results, axis=-1)


if __name__ == "__main__":
    key = jax.random.PRNGKey(0)

    # module config (deterministic, built in-script)
    box_min = np.array([[0.0, 0.0, 0.0]], np.float32)
    box_max = np.array([[1.0, 1.0, 1.0]], np.float32)
    grid_x, grid_y = 4, 4          # -> 16 blocks

    # small example input: pos_xyz of shape [N, 3]
    N = 8
    pos_xyz = jax.random.uniform(key, (N, 3), jnp.float32, minval=-0.2, maxval=1.2)

    out = get_block_mask(pos_xyz, box_min, box_max, grid_x=grid_x, grid_y=grid_y)
    out = jax.block_until_ready(out)

    ref = _reference(np.asarray(pos_xyz), box_min, box_max, grid_x, grid_y)
    assert out.shape == (N, grid_x * grid_y) and out.dtype == jnp.float32
    np.testing.assert_allclose(np.asarray(out), ref, rtol=0, atol=0)

    print("KERNEL_OK")
</pallas_src>

<mosaic_0001>
module attributes {stable_mosaic.version = 11 : i64} {
  func.func @_block_mask_kernel(%arg0: i32, %arg1: i32, %arg2: memref<8x3xf32, #tpu.memory_space<vmem>>, %arg3: memref<4x16xf32, #tpu.memory_space<vmem>>, %arg4: memref<8x16xf32, #tpu.memory_space<vmem>>) attributes {dimension_semantics = [#tpu.dimension_semantics<parallel>, #tpu.dimension_semantics<parallel>], iteration_bounds = array<i64: 1, 1>, scalar_prefetch = 0 : i64, scratch_operands = 0 : i64, tpu.core_type = #tpu.core_type<tc>, window_params = [{transform_indices = @transform_0, window_bounds = array<i64: 8, 3>}, {transform_indices = @transform_1, window_bounds = array<i64: 4, 16>}, {transform_indices = @transform_2, window_bounds = array<i64: 8, 16>}]} {
    %c0 = arith.constant 0 : index
    %c0_0 = arith.constant 0 : index
    %0 = vector.load %arg2[%c0, %c0_0] : memref<8x3xf32, #tpu.memory_space<vmem>>, vector<8x1xf32>
    %c0_1 = arith.constant 0 : index
    %c1 = arith.constant 1 : index
    %1 = vector.load %arg2[%c0_1, %c1] : memref<8x3xf32, #tpu.memory_space<vmem>>, vector<8x1xf32>
    %c0_2 = arith.constant 0 : index
    %c0_3 = arith.constant 0 : index
    %2 = vector.load %arg3[%c0_2, %c0_3] : memref<4x16xf32, #tpu.memory_space<vmem>>, vector<1x16xf32>
    %c1_4 = arith.constant 1 : index
    %c0_5 = arith.constant 0 : index
    %3 = vector.load %arg3[%c1_4, %c0_5] : memref<4x16xf32, #tpu.memory_space<vmem>>, vector<1x16xf32>
    %c2 = arith.constant 2 : index
    %c0_6 = arith.constant 0 : index
    %4 = vector.load %arg3[%c2, %c0_6] : memref<4x16xf32, #tpu.memory_space<vmem>>, vector<1x16xf32>
    %c3 = arith.constant 3 : index
    %c0_7 = arith.constant 0 : index
    %5 = vector.load %arg3[%c3, %c0_7] : memref<4x16xf32, #tpu.memory_space<vmem>>, vector<1x16xf32>
    %6 = vector.broadcast %0 : vector<8x1xf32> to vector<8x16xf32>
    %7 = vector.broadcast %2 : vector<1x16xf32> to vector<8x16xf32>
    %8 = arith.cmpf oge, %6, %7 : vector<8x16xf32>
    %9 = vector.broadcast %0 : vector<8x1xf32> to vector<8x16xf32>
    %10 = vector.broadcast %4 : vector<1x16xf32> to vector<8x16xf32>
    %11 = arith.cmpf ole, %9, %10 : vector<8x16xf32>
    %12 = arith.andi %8, %11 : vector<8x16xi1>
    %13 = vector.broadcast %1 : vector<8x1xf32> to vector<8x16xf32>
    %14 = vector.broadcast %3 : vector<1x16xf32> to vector<8x16xf32>
    %15 = arith.cmpf oge, %13, %14 : vector<8x16xf32>
    %16 = arith.andi %12, %15 : vector<8x16xi1>
    %17 = vector.broadcast %1 : vector<8x1xf32> to vector<8x16xf32>
    %18 = vector.broadcast %5 : vector<1x16xf32> to vector<8x16xf32>
    %19 = arith.cmpf ole, %17, %18 : vector<8x16xf32>
    %20 = arith.andi %16, %19 : vector<8x16xi1>
    %21 = arith.extui %20 : vector<8x16xi1> to vector<8x16xi32>
    %22 = arith.sitofp %21 : vector<8x16xi32> to vector<8x16xf32>
    %c0_8 = arith.constant 0 : index
    %c0_9 = arith.constant 0 : index
    %23 = vector.load %arg4[%c0_8, %c0_9] : memref<8x16xf32, #tpu.memory_space<vmem>>, vector<8x16xf32>
    tpu.vector_store %arg4[%c0_8, %c0_9], %22 {strides = array<i32>} : memref<8x16xf32, #tpu.memory_space<vmem>>, vector<8x16xf32>,
    return
  }
  func.func @transform_0(%arg0: i32, %arg1: i32) -> (i32, i32) {
    %c0_i32 = arith.constant 0 : i32
    %c0_i32_0 = arith.constant 0 : i32
    return %arg0, %c0_i32 : i32, i32
  }
  func.func @transform_1(%arg0: i32, %arg1: i32) -> (i32, i32) {
    %c0_i32 = arith.constant 0 : i32
    %c0_i32_0 = arith.constant 0 : i32
    return %c0_i32, %arg1 : i32, i32
  }
  func.func @transform_2(%arg0: i32, %arg1: i32) -> (i32, i32) {
    %c0_i32 = arith.constant 0 : i32
    return %arg0, %arg1 : i32, i32
  }
}

</mosaic_0001>

<llo_original>
// kernel: tile.9
$region0: #{tile.9}
  #allocation0 [shape = 's32[1]{0}', space=sflag, size = 0x4, scoped, tag = 'scoped memory for tile.9']
  %s0 = inlined_call_operand.vmem [shape: f32[4], index: 0, kind: input, shape index: {}]
  %s1 = inlined_call_operand.vmem [shape: f32[4,4], index: 1, kind: output, shape index: {}]
  // Predicated region
  $region2: #{tile.9} parent=0 // pred_check
    _
  $region3: #{tile.9} parent=0 // pred_check_branch
    %3 = sbr.rel (0) target = $region5
  $region4: #{tile.9} parent=0 // pred_region
    _
  $region5: #{tile.9} parent=0 // pred_fallthru
    _
  %v4 = vld [vmem:[%s0] ss:$0 sm:$0xff]
  %5 = vst [vmem:[%s1] sm:$0xf] %v4

// kernel: tile.11
$region0: #{tile.11}
  %s0 = inlined_call_operand.vmem [shape: f32[4,4], index: 0, kind: input, shape index: {}]
  %s1 = inlined_call_operand.vmem [shape: f32[1,16], index: 1, kind: output, shape index: {}]
  $region1: #{tile.11} parent=0
    #allocation0 [shape = 'u8[4096]{0}', space=vmem, size = 0x1000, scoped, tag = 'scoped mem for output reshape']
    #allocation1 [shape = 'u8[4096]{0}', space=vmem, size = 0x1000, scoped, tag = 'scoped mem for input reshape']
    %s3 = sshllo.u32 0, 4
    %v4 = vld [vmem:[%s0] sm:%s3]
    %5 = vst [vmem:[#allocation1] sm:%s3] %v4
    %v6 = vld [vmem:[#allocation1] sm:$0x1]
    %vm7 = vcmask 31744
    %8 = vst.msk [vmem:[#allocation0] sm:$0x1] %vm7, %v6
    %s9 = scalar_lea.vmem [#allocation1], 3
    %v10 = vld [vmem:[%s9] sm:$0x1]
    %11 = vrot.lane.b32.xlu0 %v10, 12
    %v12 = vpop.permute.xlu0 %11
    %vm13 = vcmask 130144
    %14 = vst.msk [vmem:[#allocation0] sm:$0x1] %vm13, %v12
    %s15 = scalar_lea.vmem [#allocation1], 2
    %v16 = vld [vmem:[%s15] sm:$0x1]
    %17 = vrot.lane.b32.xlu0 %v16, 8
    %v18 = vpop.permute.xlu0 %17
    %vm19 = vcmask 97344
    %20 = vst.msk [vmem:[#allocation0] sm:$0x1] %vm19, %v18
    %s21 = scalar_lea.vmem [#allocation1], 1
    %v22 = vld [vmem:[%s21] sm:$0x1]
    %23 = vrot.lane.b32.xlu0 %v22, 4
    %v24 = vpop.permute.xlu0 %23
    %vm25 = vcmask 64544
    %26 = vst.msk [vmem:[#allocation0] sm:$0x1] %vm25, %v24
    %s28 = sshllo.u32 0, 1
    %v30 = vld [vmem:[#allocation0] sm:%s28]
    %s31 = sshllo.u32 0, 1
    %32 = vst [vmem:[%s1] sm:%s31] %v30

// kernel: get_block_mask.1
$region0: #{get_block_mask.1}
  #allocation0 [shape = 'u32[]', space=smem, size = 0x4, offset = 0x4, fixed_abs, tag = 'smem constant byte address 0x4 - core index']
  #allocation1 [shape = 'u32[144,128]{1,0:T(1,128)}', space=vmem, size = 0x12000, scoped, tag = 'internal scratch']
  %s0 = inlined_call_operand.vmem [shape: f32[8,3], index: 0, kind: input, shape index: {}]
  %s1 = inlined_call_operand.vmem [shape: f32[4,16], index: 1, kind: input, shape index: {}]
  %s2 = inlined_call_operand.hbm [shape: f32[8,16], index: 2, kind: output, shape index: {}]
  %s3 = sld [smem:[#allocation0]]
  $region18: #{get_block_mask.1} parent=0
    _
  %s5 = ssub.s32 1, %s3
  %s6 = scalar_select 0, %s5, %s3
  $region1: #{get_block_mask.1} parent=0
    #allocation2 [shape = 'u8[4096]{0}', space=vmem, size = 0x1000, scoped, tag = 'output window, operand 0, single buffered']
    #allocation3 [shape = 's32[1]{0}', space=sflag, size = 0x4, scoped, tag = 'scoped memory for get_block_mask.1']
    %7 = vsyncpa [#allocation3], 0
    // Predicated region
    $region2: #{get_block_mask.1} parent=1 // pred_check
      _
    $region3: #{get_block_mask.1} parent=1 // pred_check_branch
      %9 = sbr.rel (0) target = $region5
    $region4: #{get_block_mask.1} parent=1 // pred_region
      _
    $region5: #{get_block_mask.1} parent=1 // pred_fallthru
      _
    // Predicated region
    $region6: #{get_block_mask.1} parent=1 // pred_check
      _
    $region7: #{get_block_mask.1} parent=1 // pred_check_branch
      %11 = sbr.rel (0) target = $region9
    $region8: #{get_block_mask.1} parent=1 // pred_region
      _
    $region9: #{get_block_mask.1} parent=1 // pred_fallthru
      _
    %v12 = vld [vmem:[%s0] sm:$0xff]
    %v13 = vld [vmem:[%s1] sm:$0x1]
    %v14 = vld [vmem:[%s1 + $0x1] sm:$0x1]
    %v15 = vld [vmem:[%s1 + $0x2] sm:$0x1]
    %v16 = vld [vmem:[%s1 + $0x3] sm:$0x1]
    %18 = vset.pattern.permute.xlu0 0
    %19 = vperm.xlu0 %18, %v12
    %v20 = vpop.permute.xlu0 %19
    %v22 = vlaneseq
    %v23 = vshrl.u32 %v22, 7
    %v24 = vsub.s32 0, %v23
    %v25 = vrot.slane %v13, %v24
    %vm26 = vcmp.ge.f32.partialorder %v20, %v25
    %v27 = vlaneseq
    %v28 = vshrl.u32 %v27, 7
    %v29 = vsub.s32 0, %v28
    %v30 = vrot.slane %v15, %v29
    %vm31 = vcmp.le.f32.partialorder %v20, %v30
    %vm32 = vmand %vm26, %vm31
    %33 = vset.pattern.permute.xlu0 1
    %34 = vperm.xlu0 %33, %v12
    %v35 = vpop.permute.xlu0 %34
    %v37 = vlaneseq
    %v38 = vshrl.u32 %v37, 7
    %v39 = vsub.s32 0, %v38
    %v40 = vrot.slane %v14, %v39
    %vm41 = vcmp.ge.f32.partialorder %v35, %v40
    %vm42 = vmand %vm32, %vm41
    %v43 = vlaneseq
    %v44 = vshrl.u32 %v43, 7
    %v45 = vsub.s32 0, %v44
    %v46 = vrot.slane %v16, %v45
    %vm47 = vcmp.le.f32.partialorder %v35, %v46
    %vm48 = vmand %vm42, %vm47
    %v49 = vsel %vm48, 1, 0
    %v50 = vcvt.s32.f32 %v49
    %vm51 = vcmask 130048
    %52 = vst.msk [vmem:[#allocation2] sm:$0xff] %vm51, %v50
    // Predicated region
    $region10: #{get_block_mask.1} parent=1 // pred_check
      _
    $region11: #{get_block_mask.1} parent=1 // pred_check_branch
      %54 = sbr.rel (0) target = $region13
    $region12: #{get_block_mask.1} parent=1 // pred_region
      %s56 = ssub.s32 128, 128
      %57 = vsyncadd [#allocation3], %s56
      %s59 = sshll.u32 [#allocation2], 4
      %s60 = int_to_ptr.vmem [resolvable:$true] %s59
      %62 = dma.vmem_to_hbm [thread:$0]  %s60, 128, %s2, [#allocation3]
    $region13: #{get_block_mask.1} parent=1 // pred_fallthru
      _
    // Predicated region
    $region14: #{get_block_mask.1} parent=1 // pred_check
      _
    $region15: #{get_block_mask.1} parent=1 // pred_check_branch
      %64 = sbr.rel (0) target = $region17
    $region16: #{get_block_mask.1} parent=1 // pred_region
      %65 = dma.done [#allocation3], 128
    $region17: #{get_block_mask.1} parent=1 // pred_fallthru
      _
    %66 = vsyncpa [#allocation3], 1

</llo_original>
